<compile_context>
chip_gen: v7x
topology: tpu7x:2x2x1
jax: 0.10.0
libtpu: 0.0.40
codegen_flags: <defaults>
</compile_context>

<pallas_src>
import jax
import jax.numpy as jnp
from jax.experimental import pallas as pl
from jax.experimental.pallas import tpu as pltpu


def _round_up(v, m):
    return ((v + m - 1) // m) * m


def conv1d_kernel(x_ref, w_ref, o_ref):
    # x_ref: (1, C_in_pad, L_in_pad)   one batch element (channel-padded, lane-padded)
    # w_ref: (C_out, K * C_in_pad)     bias folded into the "ones" channel column of tap 0
    # o_ref: (1, C_out, L_out_pad)     lane-dense (multiple of 128)
    x = x_ref[0]                            # (C_in_pad, L_in_pad)
    L_out_pad = o_ref.shape[2]
    C_in_pad = x.shape[0]
    K = w_ref.shape[1] // C_in_pad          # static

    # In-kernel im2col: stack K shifted (C_in_pad, L_out_pad) views along the contraction
    # (sublane) axis. Each part is 8-sublane aligned so the concat is adjacent vreg
    # placement; the shifts are cheap XLU lane rotates (free slot vs. the MXU).
    parts = [x[:, k:k + L_out_pad] for k in range(K)]
    stacked = jnp.concatenate(parts, axis=0)            # (K * C_in_pad, L_out_pad)

    # Single MXU matmul: (C_out, K*C_in_pad) @ (K*C_in_pad, L_out_pad).
    # Bias comes for free via the ones channel.
    o_ref[0] = jnp.dot(
        w_ref[...], stacked, preferred_element_type=jnp.float32
    ).astype(o_ref.dtype)


def custom_conv_layer(x, weight, bias):
    """VALID Conv1d, stride 1. x: (N, C_in, L); weight: (C_out, C_in, K); bias: (C_out,)."""
    N, C_in, L = x.shape
    C_out, _, K = weight.shape
    assert L >= K, f"Conv1d requires L >= kernel_size (got L={L}, K={K})"
    L_out = L - K + 1

    # Sublane-aligned channel count; channel index C_in is an all-ones "bias" channel.
    C_in_pad = _round_up(C_in + 1, 8)
    # Lane-dense output width and lane-aligned input width (covers all K shifted views).
    L_out_pad = _round_up(L_out, 128)
    L_in_pad = _round_up(L_out_pad + K - 1, 128)

    # Augmented input: real channels, an all-ones bias channel, zero padding channels/lanes.
    x_aug = jnp.zeros((N, C_in_pad, L_in_pad), dtype=x.dtype)
    x_aug = x_aug.at[:, :C_in, :L].set(x)
    x_aug = x_aug.at[:, C_in, :].set(jnp.asarray(1.0, dtype=x.dtype))

    # W_aug[o, k*C_in_pad + c] = weight[o, c, k] for c < C_in; bias at (k=0, c=C_in); else 0.
    w_aug = jnp.zeros((C_out, K, C_in_pad), dtype=x.dtype)
    w_aug = w_aug.at[:, :, :C_in].set(jnp.transpose(weight, (0, 2, 1)))
    w_aug = w_aug.at[:, 0, C_in].set(bias.astype(x.dtype))
    w_aug = w_aug.reshape(C_out, K * C_in_pad)

    itemsize = jnp.dtype(x.dtype).itemsize
    cost = pl.CostEstimate(
        flops=2 * N * C_out * K * C_in * L_out,
        transcendentals=0,
        bytes_accessed=(x.size + w_aug.size + N * C_out * L_out) * itemsize,
    )

    out_pad = pl.pallas_call(
        conv1d_kernel,
        out_shape=jax.ShapeDtypeStruct((N, C_out, L_out_pad), x.dtype),
        grid=(N,),
        in_specs=[
            pl.BlockSpec((1, C_in_pad, L_in_pad), lambda n: (n, 0, 0)),
            pl.BlockSpec((C_out, K * C_in_pad), lambda n: (0, 0)),
        ],
        out_specs=pl.BlockSpec((1, C_out, L_out_pad), lambda n: (n, 0, 0)),
        compiler_params=pltpu.CompilerParams(
            dimension_semantics=("parallel",)),   # batch shards across TCs on v7x
        cost_estimate=cost,
    )(x_aug, w_aug)

    # Slice off the lane padding outside the kernel (keeps in-kernel stores unmasked).
    return out_pad[:, :, :L_out]


if __name__ == "__main__":
    # Shapes consistent with the module: Conv1d(in_channels=4, out_channels=64, kernel_size=3)
    N, C_in, L = 2, 4, 16
    C_out, K = 64, 3

    key = jax.random.PRNGKey(0)
    kx, kw, kb = jax.random.split(key, 3)

    x = jax.random.normal(kx, (N, C_in, L), dtype=jnp.float32)

    # Deterministic parameter init (PyTorch-style uniform(-1/sqrt(fan_in), 1/sqrt(fan_in)))
    fan_in = C_in * K
    bound = 1.0 / (fan_in ** 0.5)
    weight = jax.random.uniform(kw, (C_out, C_in, K), jnp.float32, -bound, bound)
    bias = jax.random.uniform(kb, (C_out,), jnp.float32, -bound, bound)

    out = custom_conv_layer(x, weight, bias)
    out = jax.block_until_ready(out)

    # Reference check against XLA's conv (NCL / OIK, VALID padding)
    ref = jax.lax.conv_general_dilated(
        x, weight, window_strides=(1,), padding="VALID",
        dimension_numbers=("NCH", "OIH", "NCH")) + bias[None, :, None]
    assert out.shape == (N, C_out, L - K + 1)
    assert jnp.allclose(out, ref, atol=1e-5, rtol=1e-5)

    print("KERNEL_OK")
</pallas_src>

<mosaic_0001>
module attributes {stable_mosaic.version = 11 : i64} {
  func.func @conv1d_kernel(%arg0: i32, %arg1: memref<1x8x256xf32, #tpu.memory_space<vmem>>, %arg2: memref<64x24xf32, #tpu.memory_space<vmem>>, %arg3: memref<1x64x128xf32, #tpu.memory_space<vmem>>) attributes {dimension_semantics = [#tpu.dimension_semantics<parallel>], iteration_bounds = array<i64: 2>, scalar_prefetch = 0 : i64, scratch_operands = 0 : i64, tpu.core_type = #tpu.core_type<tc>, window_params = [{transform_indices = @transform_0, window_bounds = array<i64: 1, 8, 256>}, {pipeline_mode = #tpu.pipeline_mode<synchronous>, transform_indices = @transform_1, window_bounds = array<i64: 64, 24>}, {transform_indices = @transform_2, window_bounds = array<i64: 1, 64, 128>}]} {
    %c0 = arith.constant 0 : index
    %c0_0 = arith.constant 0 : index
    %c0_1 = arith.constant 0 : index
    %0 = vector.load %arg1[%c0, %c0_0, %c0_1] : memref<1x8x256xf32, #tpu.memory_space<vmem>>, vector<1x8x256xf32>
    %1 = vector.shape_cast %0 : vector<1x8x256xf32> to vector<8x256xf32>
    %2 = vector.extract_strided_slice %1 {offsets = [0, 0], sizes = [8, 128], strides = [1, 1]} : vector<8x256xf32> to vector<8x128xf32>
    %3 = vector.extract_strided_slice %1 {offsets = [0, 1], sizes = [8, 128], strides = [1, 1]} : vector<8x256xf32> to vector<8x128xf32>
    %4 = vector.extract_strided_slice %1 {offsets = [0, 2], sizes = [8, 128], strides = [1, 1]} : vector<8x256xf32> to vector<8x128xf32>
    %5 = tpu.concatenate %2, %3, %4 in 0 : vector<8x128xf32>, vector<8x128xf32>, vector<8x128xf32> -> vector<24x128xf32>
    %c0_2 = arith.constant 0 : index
    %c0_3 = arith.constant 0 : index
    %6 = vector.load %arg2[%c0_2, %c0_3] : memref<64x24xf32, #tpu.memory_space<vmem>>, vector<64x24xf32>
    %cst = arith.constant dense<0.000000e+00> : vector<64x128xf32>
    %7 = tpu.matmul %6, %5, %cst {dimension_numbers = #tpu.dot_dimension_numbers<[1], [0], [0], [1], [0, 0, 1, 1], [], []>} : vector<64x24xf32>, vector<24x128xf32>, vector<64x128xf32> -> vector<64x128xf32>
    %c0_4 = arith.constant 0 : index
    %c0_5 = arith.constant 0 : index
    %c0_6 = arith.constant 0 : index
    %8 = vector.load %arg3[%c0_4, %c0_5, %c0_6] : memref<1x64x128xf32, #tpu.memory_space<vmem>>, vector<1x64x128xf32>
    %9 = vector.shape_cast %8 : vector<1x64x128xf32> to vector<64x128xf32>
    %10 = vector.shape_cast %7 : vector<64x128xf32> to vector<1x64x128xf32>
    tpu.vector_store %arg3[%c0_4, %c0_5, %c0_6], %10 {strides = array<i32>} : memref<1x64x128xf32, #tpu.memory_space<vmem>>, vector<1x64x128xf32>,
    return
  }
  func.func @transform_0(%arg0: i32) -> (i32, i32, i32) {
    %c0_i32 = arith.constant 0 : i32
    %c0_i32_0 = arith.constant 0 : i32
    %c0_i32_1 = arith.constant 0 : i32
    return %arg0, %c0_i32, %c0_i32_0 : i32, i32, i32
  }
  func.func @transform_1(%arg0: i32) -> (i32, i32) {
    %c0_i32 = arith.constant 0 : i32
    %c0_i32_0 = arith.constant 0 : i32
    %c0_i32_1 = arith.constant 0 : i32
    return %c0_i32, %c0_i32_0 : i32, i32
  }
  func.func @transform_2(%arg0: i32) -> (i32, i32, i32) {
    %c0_i32 = arith.constant 0 : i32
    %c0_i32_0 = arith.constant 0 : i32
    %c0_i32_1 = arith.constant 0 : i32
    return %arg0, %c0_i32, %c0_i32_0 : i32, i32, i32
  }
}

</mosaic_0001>

<llo_original>
// kernel: tpu_custom_call.1
$region0: #{tpu_custom_call.1}
  #allocation0 [shape = 'u32[]', space=smem, size = 0x4, offset = 0x4, fixed_abs, tag = 'smem constant byte address 0x4 - core index']
  #allocation1 [shape = 'u32[144,128]{1,0:T(1,128)}', space=vmem, size = 0x12000, scoped, tag = 'internal scratch']
  %s0 = inlined_call_operand.vmem [shape: f32[2,8,256], index: 0, kind: input, shape index: {}]
  %s1 = inlined_call_operand.vmem [shape: f32[64,24], index: 1, kind: input, shape index: {}]
  %s2 = inlined_call_operand.hbm [shape: f32[2,64,128], index: 2, kind: output, shape index: {}]
  %s3 = sld [smem:[#allocation0]]
  $region41: #{tpu_custom_call.1} parent=0
    _
  %s5 = ssub.s32 1, %s3
  %s6 = scalar_select 0, %s5, %s3
  $region1: #{tpu_custom_call.1} parent=0
    #allocation2 [shape = 'u8[65536]{0}', space=vmem, size = 0x10000, scoped, tag = 'output window, operand 0']
    #allocation3 [shape = 's32[2]{0}', space=sflag, size = 0x8, scoped, tag = 'scoped memory for tpu_custom_call.1']
    %7 = vsyncpa [#allocation3], 0
    %s8 = scalar_lea.sflag [#allocation3], 1
    %9 = vsyncpa %s8, 0
    loop: start=0, step=1, limit=4
    $region2: #{tpu_custom_call.1} parent=1 // loop_pre_header
      _
    $region3: #{tpu_custom_call.1} parent=1 // loop_header
      %s11 = sphi 0, %s15
      %p12 = scmp.ge.s32.totalorder %s11, 4
      %s21 = sphi 0, %s23
      %s24 = sphi 0, %s21
      %s25 = sphi 0, %s24
      %s41 = sphi 0, %s25
      %s45 = sphi 0, %s45
      %s47 = sphi 0, %s45
      %s48 = sphi 0, %s47
      %s62 = sphi 0, %s48
      %s68 = sphi 0, %s70
      %s71 = sphi 0, %s68
      %s72 = sphi 0, %s71
      %s88 = sphi 0, %s72
    $region4: #{tpu_custom_call.1} parent=1 // loop_header_branch
      %14 = sbr.rel (%p12) target = $region8
    $region5: #{tpu_custom_call.1} parent=1 // loop_body
      %s16 = ssub.s32 %s11, 1
      %s17 = ssub.s32 %s11, 2
      %s18 = sadd.s32 %s11, 1
      %s19 = ssub.s32 %s11, %s18
      %p20 = scmp.eq.s32.totalorder %s19, 0
      %s22 = sadd.s32 %s21, 1
      %s23 = scalar_select %p20, %s21, %s22
      %p26 = pneg %p20
      %p27 = scmp.eq.s32.totalorder %s11, 1
      %p28 = por %p26, %p27
      %p29 = scmp.ne.s32.totalorder %s21, %s24
      %p30 = scmp.eq.s32.totalorder %s11, 0
      %p31 = por %p29, %p30
      %p32 = scmp.ne.s32.totalorder %s21, %s24
      %p33 = scmp.eq.s32.totalorder %s16, 1
      %p34 = por %p32, %p33
      %p35 = scmp.ne.s32.totalorder %s24, %s25
      %p36 = scmp.eq.s32.totalorder %s16, 0
      %p37 = por %p35, %p36
      %p38 = scmp.ne.s32.totalorder %s24, %s25
      %p39 = scmp.eq.s32.totalorder %s17, 1
      %p40 = por %p38, %p39
      %p42 = scmp.ne.s32.totalorder %s25, %s41
      %p43 = scmp.eq.s32.totalorder %s17, 0
      %p44 = por %p42, %p43
      %s46 = sadd.s32 %s45, 1
      %p49 = scmp.eq.s32.totalorder %s11, 1
      %p50 = scmp.ne.s32.totalorder %s45, %s47
      %p51 = scmp.eq.s32.totalorder %s11, 0
      %p52 = por %p50, %p51
      %p53 = scmp.ne.s32.totalorder %s45, %s47
      %p54 = scmp.eq.s32.totalorder %s16, 1
      %p55 = por %p53, %p54
      %p56 = scmp.ne.s32.totalorder %s47, %s48
      %p57 = scmp.eq.s32.totalorder %s16, 0
      %p58 = por %p56, %p57
      %p59 = scmp.ne.s32.totalorder %s47, %s48
      %p60 = scmp.eq.s32.totalorder %s17, 1
      %p61 = por %p59, %p60
      %p63 = scmp.ne.s32.totalorder %s48, %s62
      %p64 = scmp.eq.s32.totalorder %s17, 0
      %p65 = por %p63, %p64
      %s66 = ssub.s32 %s11, %s18
      %p67 = scmp.eq.s32.totalorder %s66, 0
      %s69 = sadd.s32 %s68, 1
      %s70 = scalar_select %p67, %s68, %s69
      %p73 = pneg %p67
      %p74 = scmp.eq.s32.totalorder %s11, 1
      %p75 = por %p73, %p74
      %p76 = scmp.ne.s32.totalorder %s68, %s71
      %p77 = scmp.eq.s32.totalorder %s11, 0
      %p78 = por %p76, %p77
      %p79 = scmp.ne.s32.totalorder %s68, %s71
      %p80 = scmp.eq.s32.totalorder %s16, 1
      %p81 = por %p79, %p80
      %p82 = scmp.ne.s32.totalorder %s71, %s72
      %p83 = scmp.eq.s32.totalorder %s16, 0
      %p84 = por %p82, %p83
      %p85 = scmp.ne.s32.totalorder %s71, %s72
      %p86 = scmp.eq.s32.totalorder %s17, 1
      %p87 = por %p85, %p86
      %p89 = scmp.ne.s32.totalorder %s72, %s88
      %p90 = scmp.eq.s32.totalorder %s17, 0
      %p91 = por %p89, %p90
      %p92 = scmp.le.s32.totalorder 1, %s11
      %p93 = scmp.lt.s32.totalorder %s11, 3
      %p94 = pnand %p92, %p93
      %p95 = pneg %p94
      // Predicated region
      $region9: #{tpu_custom_call.1} parent=5 // pred_check
        _
      $region10: #{tpu_custom_call.1} parent=5 // pred_check_branch
        %97 = sbr.rel (%p94) target = $region12
      $region11: #{tpu_custom_call.1} parent=5 // pred_region
        %s98 = ssub.s32 %s11, 1
        // Predicated region
        $region13: #{tpu_custom_call.1} parent=11 // pred_check
          %p99 = pneg %p58
        $region14: #{tpu_custom_call.1} parent=11 // pred_check_branch
          %101 = sbr.rel (%p99) target = $region16
        $region15: #{tpu_custom_call.1} parent=11 // pred_region
          _
        $region16: #{tpu_custom_call.1} parent=11 // pred_fallthru
          _
      $region12: #{tpu_custom_call.1} parent=5 // pred_fallthru
        _
      %p102 = scmp.lt.s32.totalorder %s11, 2
      // Predicated region
      $region17: #{tpu_custom_call.1} parent=5 // pred_check
        %p103 = pneg %p102
      $region18: #{tpu_custom_call.1} parent=5 // pred_check_branch
        %105 = sbr.rel (%p103) target = $region20
      $region19: #{tpu_custom_call.1} parent=5 // pred_region
        // Predicated region
        $region21: #{tpu_custom_call.1} parent=19 // pred_check
          %p106 = pneg %p31
        $region22: #{tpu_custom_call.1} parent=19 // pred_check_branch
          %108 = sbr.rel (%p106) target = $region24
        $region23: #{tpu_custom_call.1} parent=19 // pred_region
          %p109 = scmp.lt.s32.totalorder %s11, 1
          %s110 = scalar_select %p109, %s11, 1
          %s111 = smul.addr %s110, 2
          %s112 = smul.addr %s111, 8
          %s113 = scalar_lea.vmem %s0, %s112
        $region24: #{tpu_custom_call.1} parent=19 // pred_fallthru
          _
      $region20: #{tpu_custom_call.1} parent=5 // pred_fallthru
        _
      %p114 = scmp.le.s32.totalorder 1, %s11
      %p115 = scmp.lt.s32.totalorder %s11, 3
      %p116 = pnand %p114, %p115
      %p117 = pneg %p116
      // Predicated region
      $region25: #{tpu_custom_call.1} parent=5 // pred_check
        _
      $region26: #{tpu_custom_call.1} parent=5 // pred_check_branch
        %119 = sbr.rel (%p116) target = $region28
      $region27: #{tpu_custom_call.1} parent=5 // pred_region
        %s120 = ssub.s32 %s11, 1
        %p121 = scmp.lt.s32.totalorder %s16, 1
        %s122 = scalar_select %p121, %s16, 1
        %s123 = smul.addr %s122, 2
        %s124 = smul.addr %s123, 8
        %s125 = scalar_lea.vmem %s0, %s124
        %p126 = pneg %p37
        %p127 = pneg %p34
        %p128 = pneg %p58
        %p129 = pneg %p55
        %p130 = pneg %p84
        %p131 = pneg %p81
        %s132 = sand.u32 %s71, 1
        %s133 = scalar_lea.sflag [#allocation3], %s132
        %s134 = sand.u32 %s71, 1
        %s135 = smul.addr %s134, 64
        %s136 = scalar_lea.vmem [#allocation2], %s135
        %p137 = scmp.lt.s32.totalorder %s16, 1
        %s138 = scalar_select %p137, %s16, 1
        %s139 = smul.addr %s138, 2
        %s140 = smul.addr %s139, 8
        %s141 = scalar_lea.vmem %s0, %s140
        %v142 = vld [vmem:[%s141] sm:$0xff]
        %v143 = vld [vmem:[%s141 + $0x8] sm:$0xff]
        %146 = vrot.lane.b32.xlu0 %v142, 127
        %v147 = vpop.permute.xlu0 %146
        %148 = vrot.lane.b32.xlu0 %v143, 127
        %v149 = vpop.permute.xlu0 %148
        %vm150 = vcmask 1039360
        %v151 = vsel %vm150, %v147, %v149
        %153 = vrot.lane.b32.xlu0 %v142, 126
        %v154 = vpop.permute.xlu0 %153
        %155 = vrot.lane.b32.xlu0 %v143, 126
        %v156 = vpop.permute.xlu0 %155
        %vm157 = vcmask 1031168
        %v158 = vsel %vm157, %v154, %v156
        %v160 = vld [vmem:[%s1] sm:$0xff]
        %v161 = vld [vmem:[%s1 + $0x8] sm:$0xff]
        %v162 = vld [vmem:[%s1 + $0x10] sm:$0xff]
        %v163 = vld [vmem:[%s1 + $0x18] sm:$0xff]
        %v164 = vld [vmem:[%s1 + $0x20] sm:$0xff]
        %v165 = vld [vmem:[%s1 + $0x28] sm:$0xff]
        %v166 = vld [vmem:[%s1 + $0x30] sm:$0xff]
        %v167 = vld [vmem:[%s1 + $0x38] sm:$0xff]
        %vm168 = vcmask 195584
        %v170 = vsel %vm168, %v160, 0
        %v173 = vsel %vm168, %v161, 0
        %v176 = vsel %vm168, %v162, 0
        %v179 = vsel %vm168, %v163, 0
        %v182 = vsel %vm168, %v164, 0
        %v185 = vsel %vm168, %v165, 0
        %v188 = vsel %vm168, %v166, 0
        %v191 = vsel %vm168, %v167, 0
        %193 = vmatprep.subr.mxu0 0.0
        %194 = vmatpush1.msra.mxu0 %v142
        %195 = vmatprep.subr.mxu0 0.0
        %196 = vmatpush1.msra.mxu0 %v151
        %197 = vmatprep.subr.mxu0 0.0
        %198 = vmatpush1.msra.mxu0 %v158
        %199 = vmatprep.subr.mxu0 0.0
        %200 = vmatpush1.msra.mxu0 0.0
        %201 = vmatprep.subr.mxu0 0.0
        %202 = vmatpush1.msra.mxu0 0.0
        %203 = vmatprep.subr.mxu0 0.0
        %204 = vmatpush1.msra.mxu0 0.0
        %205 = vmatprep.subr.mxu0 0.0
        %206 = vmatpush1.msra.mxu0 0.0
        %207 = vmatprep.subr.mxu0 0.0
        %208 = vmatpush1.msra.mxu0 0.0
        %209 = vmatprep.subr.mxu0 0.0
        %210 = vmatpush1.msra.mxu0 0.0
        %211 = vmatprep.subr.mxu0 0.0
        %212 = vmatpush1.msra.mxu0 0.0
        %213 = vmatprep.subr.mxu0 0.0
        %214 = vmatpush1.msra.mxu0 0.0
        %215 = vmatprep.subr.mxu0 0.0
        %216 = vmatpush1.msra.mxu0 0.0
        %217 = vmatprep.subr.mxu0 0.0
        %218 = vmatpush1.msra.mxu0 0.0
        %219 = vmatprep.subr.mxu0 0.0
        %220 = vmatpush1.msra.mxu0 0.0
        %221 = vmatprep.subr.mxu0 0.0
        %222 = vmatpush1.msra.mxu0 0.0
        %223 = vmatprep.subr.mxu0 0.0
        %224 = vmatpush1.msra.mxu0 0.0
        %225 = vmatprep.subr.mxu0 0.0
        %226 = vmatpush1.msra.mxu0 0.0
        %227 = vmatprep.subr.mxu0 0.0
        %228 = vmatpush1.msra.mxu0 0.0
        %229 = vmatprep.subr.mxu0 0.0
        %230 = vmatpush1.msra.mxu0 0.0
        %231 = vmatprep.subr.mxu0 0.0
        %232 = vmatpush1.msra.mxu0 0.0
        %233 = vmatprep.subr.mxu0 0.0
        %234 = vmatpush1.msra.mxu0 0.0
        %235 = vmatprep.subr.mxu0 0.0
        %236 = vmatpush1.msra.mxu0 0.0
        %237 = vmatprep.subr.mxu0 0.0
        %238 = vmatpush1.msra.mxu0 0.0
        %239 = vmatprep.subr.mxu0 0.0
        %240 = vmatpush1.msra.mxu0 0.0
        %241 = vmatprep.subr.mxu0 0.0
        %242 = vmatpush1.msra.mxu0 0.0
        %243 = vmatprep.subr.mxu0 0.0
        %244 = vmatpush1.msra.mxu0 0.0
        %245 = vmatprep.subr.mxu0 0.0
        %246 = vmatpush1.msra.mxu0 0.0
        %247 = vmatprep.subr.mxu0 0.0
        %248 = vmatpush1.msra.mxu0 0.0
        %249 = vmatprep.subr.mxu0 0.0
        %250 = vmatpush1.msra.mxu0 0.0
        %251 = vmatprep.subr.mxu0 0.0
        %252 = vmatpush1.msra.mxu0 0.0
        %253 = vmatprep.subr.mxu0 0.0
        %254 = vmatpush1.msra.mxu0 0.0
        %255 = vmatprep.subr.mxu0 0.0
        %256 = vmatpush1.msra.mxu0 0.0
        %257 = vmatprep.mubr.f32.mxu0 0.0
        %258 = vmatmul.mubr.f32.gmra.mrb[0].mxu0 %v170
        %v259 = vpop.f32.mrb[0].mxu0
        %v260 = vadd.f32 0.0, %v259
        %v261 = vpop.f32.mrb[0].mxu0
        %262 = vmatprep.mubr.f32.mxu0 0.0
        %263 = vmatmul.mubr.f32.gmra.mrb[0].mxu0 %v173
        %v264 = vpop.f32.mrb[0].mxu0
        %v265 = vadd.f32 0.0, %v264
        %v266 = vpop.f32.mrb[0].mxu0
        %267 = vmatprep.mubr.f32.mxu0 0.0
        %268 = vmatmul.mubr.f32.gmra.mrb[0].mxu0 %v176
        %v269 = vpop.f32.mrb[0].mxu0
        %v270 = vadd.f32 0.0, %v269
        %v271 = vpop.f32.mrb[0].mxu0
        %272 = vmatprep.mubr.f32.mxu0 0.0
        %273 = vmatmul.mubr.f32.gmra.mrb[0].mxu0 %v179
        %v274 = vpop.f32.mrb[0].mxu0
        %v275 = vadd.f32 0.0, %v274
        %v276 = vpop.f32.mrb[0].mxu0
        %277 = vmatprep.mubr.f32.mxu0 0.0
        %278 = vmatmul.mubr.f32.gmra.mrb[0].mxu0 %v182
        %v279 = vpop.f32.mrb[0].mxu0
        %v280 = vadd.f32 0.0, %v279
        %v281 = vpop.f32.mrb[0].mxu0
        %282 = vmatprep.mubr.f32.mxu0 0.0
        %283 = vmatmul.mubr.f32.gmra.mrb[0].mxu0 %v185
        %v284 = vpop.f32.mrb[0].mxu0
        %v285 = vadd.f32 0.0, %v284
        %v286 = vpop.f32.mrb[0].mxu0
        %287 = vmatprep.mubr.f32.mxu0 0.0
        %288 = vmatmul.mubr.f32.gmra.mrb[0].mxu0 %v188
        %v289 = vpop.f32.mrb[0].mxu0
        %v290 = vadd.f32 0.0, %v289
        %v291 = vpop.f32.mrb[0].mxu0
        %292 = vmatprep.mubr.f32.mxu0 0.0
        %293 = vmatmul.mubr.f32.gmra.mrb[0].mxu0 %v191
        %v294 = vpop.f32.mrb[0].mxu0
        %v295 = vadd.f32 0.0, %v294
        %v296 = vpop.f32.mrb[0].mxu0
        %297 = vdwg.mxu0
        %298 = vst [vmem:[%s136] sm:$0xff] %v260
        %299 = vst [vmem:[%s136 + $0x8] sm:$0xff] %v265
        %300 = vst [vmem:[%s136 + $0x10] sm:$0xff] %v270
        %301 = vst [vmem:[%s136 + $0x18] sm:$0xff] %v275
        %302 = vst [vmem:[%s136 + $0x20] sm:$0xff] %v280
        %303 = vst [vmem:[%s136 + $0x28] sm:$0xff] %v285
        %304 = vst [vmem:[%s136 + $0x30] sm:$0xff] %v290
        %305 = vst [vmem:[%s136 + $0x38] sm:$0xff] %v295
        %s306 = sand.u32 %s71, 1
        %s307 = scalar_lea.sflag [#allocation3], %s306
        %s308 = sand.u32 %s71, 1
        %s309 = smul.addr %s308, 64
        %s310 = scalar_lea.vmem [#allocation2], %s309
        // Predicated region
        $region29: #{tpu_custom_call.1} parent=27 // pred_check
          %p311 = pneg %p81
        $region30: #{tpu_custom_call.1} parent=27 // pred_check_branch
          %313 = sbr.rel (%p311) target = $region32
        $region31: #{tpu_custom_call.1} parent=27 // pred_region
          %s315 = ssub.s32 1024, 1024
          %316 = vsyncadd %s307, %s315
          %s317 = smul.addr %s16, 8
          %s318 = smul.addr %s317, 128
          %s319 = scalar_lea.hbm %s2, %s318
          %s320 = sshll.u32 %s310, 4
          %s321 = int_to_ptr.vmem [resolvable:$true] %s320
          %326 = dma.vmem_to_hbm [thread:$0]  %s321, 1024, %s319, %s307, 128, 128, 8
        $region32: #{tpu_custom_call.1} parent=27 // pred_fallthru
          _
      $region28: #{tpu_custom_call.1} parent=5 // pred_fallthru
        _
      %p327 = scmp.le.s32.totalorder 2, %s11
      // Predicated region
      $region33: #{tpu_custom_call.1} parent=5 // pred_check
        %p328 = pneg %p327
      $region34: #{tpu_custom_call.1} parent=5 // pred_check_branch
        %330 = sbr.rel (%p328) target = $region36
      $region35: #{tpu_custom_call.1} parent=5 // pred_region
        %s331 = ssub.s32 %s11, 2
        // Predicated region
        $region37: #{tpu_custom_call.1} parent=35 // pred_check
          %p332 = pneg %p87
        $region38: #{tpu_custom_call.1} parent=35 // pred_check_branch
          %334 = sbr.rel (%p332) target = $region40
        $region39: #{tpu_custom_call.1} parent=35 // pred_region
          %s335 = sand.u32 %s72, 1
          %s336 = scalar_lea.sflag [#allocation3], %s335
          %s337 = sand.u32 %s72, 1
          %s338 = smul.addr %s337, 64
          %s339 = scalar_lea.vmem [#allocation2], %s338
          %340 = dma.done %s336, 1024
        $region40: #{tpu_custom_call.1} parent=35 // pred_fallthru
          _
      $region36: #{tpu_custom_call.1} parent=5 // pred_fallthru
        _
    $region6: #{tpu_custom_call.1} parent=1 // loop_footer
      %s15 = sadd.s32 1, %s11
    $region7: #{tpu_custom_call.1} parent=1 // loop_footer_branch
      %10 = sbr.rel target = $region3
    $region8: #{tpu_custom_call.1} parent=1 // loop_exit
      _
    %341 = vsyncpa [#allocation3], 1
    %s342 = scalar_lea.sflag [#allocation3], 1
    %343 = vsyncpa %s342, 1

</llo_original>
